<compile_context>
chip_gen: v7x
topology: tpu7x:2x2x1
jax: 0.10.0
libtpu: 0.0.40
codegen_flags: <defaults>
</compile_context>

<pallas_src>
import functools

import jax
import jax.numpy as jnp
from jax import lax
from jax.experimental import pallas as pl
from jax.experimental.pallas import tpu as pltpu


def _round_up(x, m):
    return (x + m - 1) // m * m


# ----------------- Pass 1a: conv matmul, full-K resident weight -------------
def _conv_kernel_fullk(p_ref, w_ref, y_ref, stats_ref):
    """Grid = (m_tiles,). One folded (TM,K)@(K,COUTP) contraction on the MXU.

    Writes the conv tile as bf16 and the per-tile BN partials (sum, sum_sq)
    computed from the f32 accumulator before the cast.
    """
    acc = jnp.dot(p_ref[...], w_ref[...], preferred_element_type=jnp.float32)
    stats_ref[0:1, :] = jnp.sum(acc, axis=0, keepdims=True)
    stats_ref[1:2, :] = jnp.sum(acc * acc, axis=0, keepdims=True)
    y_ref[...] = acc.astype(y_ref.dtype)


# ----------------- Pass 1b: conv matmul, tiled contraction (fallback) -------
def _conv_kernel_ktiled(p_ref, w_ref, y_ref, stats_ref, acc_ref):
    """Grid = (m_tiles, k_tiles). Accumulate into f32 scratch; finalize on last k."""
    k = pl.program_id(1)
    prod = jnp.dot(p_ref[...], w_ref[...], preferred_element_type=jnp.float32)

    @pl.when(k == 0)
    def _():
        acc_ref[...] = prod

    @pl.when(k > 0)
    def _():
        acc_ref[...] += prod

    @pl.when(k == pl.num_programs(1) - 1)
    def _():
        acc = acc_ref[...]
        stats_ref[0:1, :] = jnp.sum(acc, axis=0, keepdims=True)
        stats_ref[1:2, :] = jnp.sum(acc * acc, axis=0, keepdims=True)
        y_ref[...] = acc.astype(y_ref.dtype)


# ----------------- Pass 2: streaming scale*y + shift (+ ReLU) ---------------
def _bn_relu_kernel(y_ref, sc_ref, o_ref, *, need_relu):
    """Grid = (m_tiles,). Pure streaming FMA (+ReLU); scale/shift precomputed."""
    scale = sc_ref[0:1, :]
    shift = sc_ref[1:2, :]
    y = y_ref[...].astype(jnp.float32) * scale + shift
    if need_relu:
        y = jnp.maximum(y, 0.0)
    o_ref[...] = y.astype(o_ref.dtype)


# --------------------------------- Wrapper ----------------------------------
def basic_conv2d(x_nchw, weight, bias, gamma, beta, *,
                 stride=1, padding=1, need_relu=True, eps=1e-5,
                 mxu_dtype=jnp.bfloat16, tile_m=512,
                 vmem_limit_bytes=48 * 1024 * 1024):
    """Pallas implementation of BasicConv2d.forward (training-mode BN).

    x_nchw: (N, Cin, H, W)     weight: (Cout, Cin, KH, KW) (PyTorch layout)
    bias/gamma/beta: (Cout,)   returns: (N, Cout, Ho, Wo), float32
    """
    N, Cin, H, W = x_nchw.shape
    Cout, _, KH, KW = weight.shape
    Ho = (H + 2 * padding - KH) // stride + 1
    Wo = (W + 2 * padding - KW) // stride + 1
    M = N * Ho * Wo
    K = KH * KW * Cin

    # Conv bias is exactly cancelled by the training-mode BN mean subtraction.
    del bias

    # ---- layout plumbing: cast to bf16 first, then NHWC halo pad + im2col ---
    x_nhwc = jnp.transpose(x_nchw, (0, 2, 3, 1)).astype(mxu_dtype)
    x_pad = jnp.pad(x_nhwc,
                    ((0, 0), (padding, padding), (padding, padding), (0, 0)))
    cols = []
    for kh in range(KH):
        for kw in range(KW):
            cols.append(x_pad[:, kh:kh + (Ho - 1) * stride + 1:stride,
                                 kw:kw + (Wo - 1) * stride + 1:stride, :])
    patches = jnp.concatenate(cols, axis=-1).reshape(M, K)  # feature order (kh,kw,cin)

    # ---- lane/sublane-aligned sizes and VMEM-budgeted tile selection --------
    COUTP = _round_up(Cout, 128)        # lane-dense output channels
    K_full = _round_up(K, 128)
    M8 = _round_up(M, 8)
    budget = int(vmem_limit_bytes * 0.75)   # headroom for compiler scratch

    def footprint(tm, tk, nk):
        b = 2 * tm * tk * 2             # patches tile, double-buffered bf16
        b += 2 * tk * COUTP * 2         # weight tile (conservatively x2), bf16
        b += 2 * tm * COUTP * 2         # bf16 conv output tile, double-buffered
        b += 2 * 8 * COUTP * 4          # stats tile
        if nk > 1:
            b += tm * COUTP * 4         # f32 accumulator scratch
        return b

    TM = min(tile_m, M8)
    if M8 > 8:                          # keep >= 2 M tiles (both v7x TCs busy)
        TM = min(TM, max(8, _round_up(-(-M8 // 2), 8)))
    while footprint(TM, K_full, 1) > budget and TM > 256:
        TM = max(256, _round_up(TM // 2, 8))

    TK, K_pad, n_k = K_full, K_full, 1  # prefer full-K resident weight
    while footprint(TM, TK, n_k) > budget and TK > 128:
        TK = max(128, _round_up(TK // 2, 128))
        K_pad = _round_up(K, TK)
        n_k = K_pad // TK
    while footprint(TM, TK, n_k) > budget and TM > 8:
        TM = max(8, _round_up(TM // 2, 8))

    M_pad = _round_up(M, TM)
    n_m = M_pad // TM

    patches = jnp.pad(patches, ((0, M_pad - M), (0, K_pad - K)))
    w2 = jnp.transpose(weight, (2, 3, 1, 0)).reshape(K, Cout).astype(mxu_dtype)
    w2 = jnp.pad(w2, ((0, K_pad - K), (0, COUTP - Cout)))

    cost1 = pl.CostEstimate(
        flops=2 * M_pad * K_pad * COUTP + 3 * M_pad * COUTP,
        transcendentals=0,
        bytes_accessed=(M_pad * K_pad + K_pad * COUTP + M_pad * COUTP) * 2
                       + n_m * 8 * COUTP * 4)

    # ---- pass 1: tiled conv matmul + per-tile BN partial sums ---------------
    if n_k == 1:
        y_conv, stats = pl.pallas_call(
            _conv_kernel_fullk,
            grid=(n_m,),
            in_specs=(
                pl.BlockSpec((TM, K_pad), lambda i: (i, 0)),
                pl.BlockSpec((K_pad, COUTP), lambda i: (0, 0)),  # resident, fetched once
            ),
            out_specs=(
                pl.BlockSpec((TM, COUTP), lambda i: (i, 0)),
                pl.BlockSpec((8, COUTP), lambda i: (i, 0)),
            ),
            out_shape=(
                jax.ShapeDtypeStruct((M_pad, COUTP), mxu_dtype),      # bf16 intermediate
                jax.ShapeDtypeStruct((n_m * 8, COUTP), jnp.float32),  # per-tile partials
            ),
            compiler_params=pltpu.CompilerParams(
                dimension_semantics=("parallel",),
                vmem_limit_bytes=vmem_limit_bytes),
            cost_estimate=cost1,
        )(patches, w2)
    else:
        y_conv, stats = pl.pallas_call(
            _conv_kernel_ktiled,
            grid=(n_m, n_k),
            in_specs=(
                pl.BlockSpec((TM, TK), lambda i, k: (i, k)),
                pl.BlockSpec((TK, COUTP), lambda i, k: (k, 0)),
            ),
            out_specs=(
                pl.BlockSpec((TM, COUTP), lambda i, k: (i, 0)),
                pl.BlockSpec((8, COUTP), lambda i, k: (i, 0)),
            ),
            out_shape=(
                jax.ShapeDtypeStruct((M_pad, COUTP), mxu_dtype),
                jax.ShapeDtypeStruct((n_m * 8, COUTP), jnp.float32),
            ),
            scratch_shapes=[pltpu.VMEM((TM, COUTP), jnp.float32)],
            compiler_params=pltpu.CompilerParams(
                dimension_semantics=("parallel", "arbitrary"),
                vmem_limit_bytes=vmem_limit_bytes),
            cost_estimate=cost1,
        )(patches, w2)

    # ---- BN stats reduction + scale/shift, hoisted out of pass 2 ------------
    # (Padded M rows are zero-valued and contribute nothing; divisor is true M.)
    stats = stats.reshape(n_m, 8, COUTP)
    s = jnp.sum(stats[:, 0, :], axis=0)                 # per-channel sum
    ss = jnp.sum(stats[:, 1, :], axis=0)                # per-channel sum of squares
    inv_m = 1.0 / float(M)
    mean = s * inv_m
    var = jnp.maximum(ss * inv_m - mean * mean, 0.0)    # biased (training-mode) variance
    gamma_p = jnp.zeros((COUTP,), jnp.float32).at[:Cout].set(gamma.astype(jnp.float32))
    beta_p = jnp.zeros((COUTP,), jnp.float32).at[:Cout].set(beta.astype(jnp.float32))
    scale = gamma_p * lax.rsqrt(var + eps)
    shift = beta_p - mean * scale
    sc_sh = jnp.zeros((8, COUTP), jnp.float32).at[0].set(scale).at[1].set(shift)

    cost2 = pl.CostEstimate(
        flops=3 * M_pad * COUTP,
        transcendentals=0,
        bytes_accessed=M_pad * COUTP * 2 + 8 * COUTP * 4 + M_pad * COUTP * 4)

    # ---- pass 2: streaming normalize + affine + ReLU ------------------------
    out = pl.pallas_call(
        functools.partial(_bn_relu_kernel, need_relu=need_relu),
        grid=(n_m,),
        in_specs=(
            pl.BlockSpec((TM, COUTP), lambda i: (i, 0)),
            pl.BlockSpec((8, COUTP), lambda i: (0, 0)),
        ),
        out_specs=pl.BlockSpec((TM, COUTP), lambda i: (i, 0)),
        out_shape=jax.ShapeDtypeStruct((M_pad, COUTP), jnp.float32),
        compiler_params=pltpu.CompilerParams(
            dimension_semantics=("parallel",),
            vmem_limit_bytes=vmem_limit_bytes),
        cost_estimate=cost2,
    )(y_conv, sc_sh)

    out = out[:M, :Cout].reshape(N, Ho, Wo, Cout)
    return jnp.transpose(out, (0, 3, 1, 2))   # back to PyTorch NCHW


# -------------------------------- Reference ----------------------------------
def _reference(x_nchw, weight, bias, gamma, beta, *,
               stride=1, padding=1, need_relu=True, eps=1e-5,
               conv_dtype=jnp.bfloat16):
    """Pure-JAX reference: conv (with bias) + training-mode BN + ReLU.

    Conv operands are cast to `conv_dtype` (f32 accumulation) so the comparison
    is apples-to-apples with the bf16-fed MXU kernel. The bias is KEPT here —
    the kernel drops it, relying on exact cancellation by the BN mean.
    """
    y = lax.conv_general_dilated(
        x_nchw.astype(conv_dtype), weight.astype(conv_dtype),
        window_strides=(stride, stride),
        padding=((padding, padding), (padding, padding)),
        dimension_numbers=("NCHW", "OIHW", "NCHW"),
        preferred_element_type=jnp.float32)
    y = y + bias.reshape(1, -1, 1, 1).astype(jnp.float32)
    mean = jnp.mean(y, axis=(0, 2, 3), keepdims=True)
    var = jnp.mean((y - mean) ** 2, axis=(0, 2, 3), keepdims=True)
    y = (y - mean) * lax.rsqrt(var + eps)
    y = y * gamma.reshape(1, -1, 1, 1) + beta.reshape(1, -1, 1, 1)
    if need_relu:
        y = jnp.maximum(y, 0.0)
    return y


if __name__ == "__main__":
    # Module-consistent small shapes: N=2, Cin=4, H=W=16, Cout=8, k=3, s=1, p=1.
    # M = 512 rows -> 2 tiles of 256: exercises the cross-tile BN reduction and
    # gives the v7x "parallel" M axis two tiles of work.
    N, Cin, H, W = 2, 4, 16, 16
    Cout, Kk, stride, padding = 8, 3, 1, 1

    key = jax.random.PRNGKey(0)
    kx, kw, kb, kg, kbt = jax.random.split(key, 5)
    x = jax.random.normal(kx, (N, Cin, H, W), dtype=jnp.float32)
    weight = jax.random.normal(kw, (Cout, Cin, Kk, Kk), dtype=jnp.float32) \
        * (1.0 / (Cin * Kk * Kk) ** 0.5)
    bias = jax.random.normal(kb, (Cout,), dtype=jnp.float32) * 0.1
    gamma = 1.0 + 0.1 * jax.random.normal(kg, (Cout,), dtype=jnp.float32)
    beta = 0.1 * jax.random.normal(kbt, (Cout,), dtype=jnp.float32)

    fn = jax.jit(functools.partial(basic_conv2d, stride=stride, padding=padding,
                                   need_relu=True))
    out = jax.block_until_ready(fn(x, weight, bias, gamma, beta))

    ref = _reference(x, weight, bias, gamma, beta,
                     stride=stride, padding=padding, need_relu=True)
    assert out.shape == (N, Cout, H, W)
    # Tolerance budget: the bf16 pass-1 intermediate contributes up to ~a
    # half-ulp of bf16 at |y|~4 (≈1.5e-2 after normalization); BN stats are
    # still computed in f32, so errors beyond that indicate a real bug.
    err = float(jnp.max(jnp.abs(out - ref)))
    assert jnp.allclose(out, ref, atol=2e-2, rtol=2e-2), err

    print("KERNEL_OK")
</pallas_src>

<mosaic_0001>
module attributes {stable_mosaic.version = 11 : i64} {
  func.func @_conv_kernel_fullk(%arg0: i32, %arg1: memref<256x128xbf16, #tpu.memory_space<vmem>>, %arg2: memref<128x128xbf16, #tpu.memory_space<vmem>>, %arg3: memref<256x128xbf16, #tpu.memory_space<vmem>>, %arg4: memref<8x128xf32, #tpu.memory_space<vmem>>) attributes {dimension_semantics = [#tpu.dimension_semantics<parallel>], iteration_bounds = array<i64: 2>, scalar_prefetch = 0 : i64, scratch_operands = 0 : i64, tpu.core_type = #tpu.core_type<tc>, window_params = [{transform_indices = @transform_0, window_bounds = array<i64: 256, 128>}, {pipeline_mode = #tpu.pipeline_mode<synchronous>, transform_indices = @transform_1, window_bounds = array<i64: 128, 128>}, {transform_indices = @transform_2, window_bounds = array<i64: 256, 128>}, {transform_indices = @transform_3, window_bounds = array<i64: 8, 128>}]} {
    %c0 = arith.constant 0 : index
    %c0_0 = arith.constant 0 : index
    %0 = vector.load %arg1[%c0, %c0_0] : memref<256x128xbf16, #tpu.memory_space<vmem>>, vector<256x128xbf16>
    %c0_1 = arith.constant 0 : index
    %c0_2 = arith.constant 0 : index
    %1 = vector.load %arg2[%c0_1, %c0_2] : memref<128x128xbf16, #tpu.memory_space<vmem>>, vector<128x128xbf16>
    %cst = arith.constant dense<0.000000e+00> : vector<256x128xf32>
    %2 = tpu.matmul %0, %1, %cst {dimension_numbers = #tpu.dot_dimension_numbers<[1], [0], [0], [1], [0, 0, 1, 1], [], []>} : vector<256x128xbf16>, vector<128x128xbf16>, vector<256x128xf32> -> vector<256x128xf32>
    %cst_3 = arith.constant dense<0.000000e+00> : vector<128xf32>
    %3 = vector.multi_reduction <add>, %2, %cst_3 [0] : vector<256x128xf32> to vector<128xf32>
    %4 = vector.shape_cast %3 : vector<128xf32> to vector<1x128xf32>
    %c0_4 = arith.constant 0 : index
    %c0_5 = arith.constant 0 : index
    %5 = vector.load %arg4[%c0_4, %c0_5] : memref<8x128xf32, #tpu.memory_space<vmem>>, vector<1x128xf32>
    tpu.vector_store %arg4[%c0_4, %c0_5], %4 {strides = array<i32>} : memref<8x128xf32, #tpu.memory_space<vmem>>, vector<1x128xf32>,
    %6 = arith.mulf %2, %2 : vector<256x128xf32>
    %cst_6 = arith.constant dense<0.000000e+00> : vector<128xf32>
    %7 = vector.multi_reduction <add>, %6, %cst_6 [0] : vector<256x128xf32> to vector<128xf32>
    %8 = vector.shape_cast %7 : vector<128xf32> to vector<1x128xf32>
    %c1 = arith.constant 1 : index
    %c0_7 = arith.constant 0 : index
    %9 = vector.load %arg4[%c1, %c0_7] : memref<8x128xf32, #tpu.memory_space<vmem>>, vector<1x128xf32>
    tpu.vector_store %arg4[%c1, %c0_7], %8 {strides = array<i32>} : memref<8x128xf32, #tpu.memory_space<vmem>>, vector<1x128xf32>,
    %10 = arith.truncf %2 : vector<256x128xf32> to vector<256x128xbf16>
    %c0_8 = arith.constant 0 : index
    %c0_9 = arith.constant 0 : index
    %11 = vector.load %arg3[%c0_8, %c0_9] : memref<256x128xbf16, #tpu.memory_space<vmem>>, vector<256x128xbf16>
    tpu.vector_store %arg3[%c0_8, %c0_9], %10 {strides = array<i32>} : memref<256x128xbf16, #tpu.memory_space<vmem>>, vector<256x128xbf16>,
    return
  }
  func.func @transform_0(%arg0: i32) -> (i32, i32) {
    %c0_i32 = arith.constant 0 : i32
    %c0_i32_0 = arith.constant 0 : i32
    return %arg0, %c0_i32 : i32, i32
  }
  func.func @transform_1(%arg0: i32) -> (i32, i32) {
    %c0_i32 = arith.constant 0 : i32
    %c0_i32_0 = arith.constant 0 : i32
    %c0_i32_1 = arith.constant 0 : i32
    return %c0_i32, %c0_i32_0 : i32, i32
  }
  func.func @transform_2(%arg0: i32) -> (i32, i32) {
    %c0_i32 = arith.constant 0 : i32
    %c0_i32_0 = arith.constant 0 : i32
    return %arg0, %c0_i32 : i32, i32
  }
  func.func @transform_3(%arg0: i32) -> (i32, i32) {
    %c0_i32 = arith.constant 0 : i32
    %c0_i32_0 = arith.constant 0 : i32
    return %arg0, %c0_i32 : i32, i32
  }
}

module attributes {stable_mosaic.version = 11 : i64} {
  func.func @_bn_relu_kernel(%arg0: i32, %arg1: memref<256x128xbf16, #tpu.memory_space<vmem>>, %arg2: memref<8x128xf32, #tpu.memory_space<vmem>>, %arg3: memref<256x128xf32, #tpu.memory_space<vmem>>) attributes {dimension_semantics = [#tpu.dimension_semantics<parallel>], iteration_bounds = array<i64: 2>, scalar_prefetch = 0 : i64, scratch_operands = 0 : i64, tpu.core_type = #tpu.core_type<tc>, window_params = [{transform_indices = @transform_0, window_bounds = array<i64: 256, 128>}, {pipeline_mode = #tpu.pipeline_mode<synchronous>, transform_indices = @transform_1, window_bounds = array<i64: 8, 128>}, {transform_indices = @transform_2, window_bounds = array<i64: 256, 128>}]} {
    %c0 = arith.constant 0 : index
    %c0_0 = arith.constant 0 : index
    %0 = vector.load %arg2[%c0, %c0_0] : memref<8x128xf32, #tpu.memory_space<vmem>>, vector<1x128xf32>
    %c1 = arith.constant 1 : index
    %c0_1 = arith.constant 0 : index
    %1 = vector.load %arg2[%c1, %c0_1] : memref<8x128xf32, #tpu.memory_space<vmem>>, vector<1x128xf32>
    %c0_2 = arith.constant 0 : index
    %c0_3 = arith.constant 0 : index
    %2 = vector.load %arg1[%c0_2, %c0_3] : memref<256x128xbf16, #tpu.memory_space<vmem>>, vector<256x128xbf16>
    %3 = arith.extf %2 : vector<256x128xbf16> to vector<256x128xf32>
    %4 = vector.broadcast %0 : vector<1x128xf32> to vector<256x128xf32>
    %5 = arith.mulf %3, %4 : vector<256x128xf32>
    %6 = vector.broadcast %1 : vector<1x128xf32> to vector<256x128xf32>
    %7 = arith.addf %5, %6 : vector<256x128xf32>
    %cst = arith.constant 0.000000e+00 : f32
    %8 = vector.broadcast %cst : f32 to vector<256x128xf32>
    %9 = arith.maximumf %7, %8 : vector<256x128xf32>
    %c0_4 = arith.constant 0 : index
    %c0_5 = arith.constant 0 : index
    %10 = vector.load %arg3[%c0_4, %c0_5] : memref<256x128xf32, #tpu.memory_space<vmem>>, vector<256x128xf32>
    tpu.vector_store %arg3[%c0_4, %c0_5], %9 {strides = array<i32>} : memref<256x128xf32, #tpu.memory_space<vmem>>, vector<256x128xf32>,
    return
  }
  func.func @transform_0(%arg0: i32) -> (i32, i32) {
    %c0_i32 = arith.constant 0 : i32
    %c0_i32_0 = arith.constant 0 : i32
    return %arg0, %c0_i32 : i32, i32
  }
  func.func @transform_1(%arg0: i32) -> (i32, i32) {
    %c0_i32 = arith.constant 0 : i32
    %c0_i32_0 = arith.constant 0 : i32
    %c0_i32_1 = arith.constant 0 : i32
    return %c0_i32, %c0_i32_0 : i32, i32
  }
  func.func @transform_2(%arg0: i32) -> (i32, i32) {
    %c0_i32 = arith.constant 0 : i32
    %c0_i32_0 = arith.constant 0 : i32
    return %arg0, %c0_i32 : i32, i32
  }
}

</mosaic_0001>

<llo_original>
// kernel: basic_conv2d.3
$region0: #{basic_conv2d.3}
  #allocation0 [shape = 'u32[]', space=smem, size = 0x4, offset = 0x4, fixed_abs, tag = 'smem constant byte address 0x4 - core index']
  #allocation1 [shape = 'u32[144,128]{1,0:T(1,128)}', space=vmem, size = 0x12000, scoped, tag = 'internal scratch']
  %s0 = inlined_call_operand.vmem [shape: bf16[512,128], index: 0, kind: input, shape index: {}]
  %s1 = inlined_call_operand.vmem [shape: f32[8,128], index: 1, kind: input, shape index: {}]
  %s2 = inlined_call_operand.vmem [shape: f32[512,128], index: 2, kind: output, shape index: {}]
  %s3 = sld [smem:[#allocation0]]
  $region41: #{basic_conv2d.3} parent=0
    _
  %s5 = ssub.s32 1, %s3
  %s6 = scalar_select 0, %s5, %s3
  loop: start=0, step=1, limit=4
  $region2: #{basic_conv2d.3} parent=0 // loop_pre_header
    _
  $region3: #{basic_conv2d.3} parent=0 // loop_header
    %s8 = sphi 0, %s12
    %p9 = scmp.ge.s32.totalorder %s8, 4
    %s18 = sphi 0, %s20
    %s21 = sphi 0, %s18
    %s22 = sphi 0, %s21
    %s38 = sphi 0, %s22
    %s42 = sphi 0, %s42
    %s44 = sphi 0, %s42
    %s45 = sphi 0, %s44
    %s59 = sphi 0, %s45
    %s65 = sphi 0, %s67
    %s68 = sphi 0, %s65
    %s69 = sphi 0, %s68
    %s85 = sphi 0, %s69
  $region4: #{basic_conv2d.3} parent=0 // loop_header_branch
    %11 = sbr.rel (%p9) target = $region8
  $region5: #{basic_conv2d.3} parent=0 // loop_body
    %s13 = ssub.s32 %s8, 1
    %s14 = ssub.s32 %s8, 2
    %s15 = sadd.s32 %s8, 1
    %s16 = ssub.s32 %s8, %s15
    %p17 = scmp.eq.s32.totalorder %s16, 0
    %s19 = sadd.s32 %s18, 1
    %s20 = scalar_select %p17, %s18, %s19
    %p23 = pneg %p17
    %p24 = scmp.eq.s32.totalorder %s8, 1
    %p25 = por %p23, %p24
    %p26 = scmp.ne.s32.totalorder %s18, %s21
    %p27 = scmp.eq.s32.totalorder %s8, 0
    %p28 = por %p26, %p27
    %p29 = scmp.ne.s32.totalorder %s18, %s21
    %p30 = scmp.eq.s32.totalorder %s13, 1
    %p31 = por %p29, %p30
    %p32 = scmp.ne.s32.totalorder %s21, %s22
    %p33 = scmp.eq.s32.totalorder %s13, 0
    %p34 = por %p32, %p33
    %p35 = scmp.ne.s32.totalorder %s21, %s22
    %p36 = scmp.eq.s32.totalorder %s14, 1
    %p37 = por %p35, %p36
    %p39 = scmp.ne.s32.totalorder %s22, %s38
    %p40 = scmp.eq.s32.totalorder %s14, 0
    %p41 = por %p39, %p40
    %s43 = sadd.s32 %s42, 1
    %p46 = scmp.eq.s32.totalorder %s8, 1
    %p47 = scmp.ne.s32.totalorder %s42, %s44
    %p48 = scmp.eq.s32.totalorder %s8, 0
    %p49 = por %p47, %p48
    %p50 = scmp.ne.s32.totalorder %s42, %s44
    %p51 = scmp.eq.s32.totalorder %s13, 1
    %p52 = por %p50, %p51
    %p53 = scmp.ne.s32.totalorder %s44, %s45
    %p54 = scmp.eq.s32.totalorder %s13, 0
    %p55 = por %p53, %p54
    %p56 = scmp.ne.s32.totalorder %s44, %s45
    %p57 = scmp.eq.s32.totalorder %s14, 1
    %p58 = por %p56, %p57
    %p60 = scmp.ne.s32.totalorder %s45, %s59
    %p61 = scmp.eq.s32.totalorder %s14, 0
    %p62 = por %p60, %p61
    %s63 = ssub.s32 %s8, %s15
    %p64 = scmp.eq.s32.totalorder %s63, 0
    %s66 = sadd.s32 %s65, 1
    %s67 = scalar_select %p64, %s65, %s66
    %p70 = pneg %p64
    %p71 = scmp.eq.s32.totalorder %s8, 1
    %p72 = por %p70, %p71
    %p73 = scmp.ne.s32.totalorder %s65, %s68
    %p74 = scmp.eq.s32.totalorder %s8, 0
    %p75 = por %p73, %p74
    %p76 = scmp.ne.s32.totalorder %s65, %s68
    %p77 = scmp.eq.s32.totalorder %s13, 1
    %p78 = por %p76, %p77
    %p79 = scmp.ne.s32.totalorder %s68, %s69
    %p80 = scmp.eq.s32.totalorder %s13, 0
    %p81 = por %p79, %p80
    %p82 = scmp.ne.s32.totalorder %s68, %s69
    %p83 = scmp.eq.s32.totalorder %s14, 1
    %p84 = por %p82, %p83
    %p86 = scmp.ne.s32.totalorder %s69, %s85
    %p87 = scmp.eq.s32.totalorder %s14, 0
    %p88 = por %p86, %p87
    %p89 = scmp.le.s32.totalorder 1, %s8
    %p90 = scmp.lt.s32.totalorder %s8, 3
    %p91 = pnand %p89, %p90
    %p92 = pneg %p91
    // Predicated region
    $region9: #{basic_conv2d.3} parent=5 // pred_check
      _
    $region10: #{basic_conv2d.3} parent=5 // pred_check_branch
      %94 = sbr.rel (%p91) target = $region12
    $region11: #{basic_conv2d.3} parent=5 // pred_region
      %s95 = ssub.s32 %s8, 1
      // Predicated region
      $region13: #{basic_conv2d.3} parent=11 // pred_check
        %p96 = pneg %p55
      $region14: #{basic_conv2d.3} parent=11 // pred_check_branch
        %98 = sbr.rel (%p96) target = $region16
      $region15: #{basic_conv2d.3} parent=11 // pred_region
        _
      $region16: #{basic_conv2d.3} parent=11 // pred_fallthru
        _
    $region12: #{basic_conv2d.3} parent=5 // pred_fallthru
      _
    %p99 = scmp.lt.s32.totalorder %s8, 2
    // Predicated region
    $region17: #{basic_conv2d.3} parent=5 // pred_check
      %p100 = pneg %p99
    $region18: #{basic_conv2d.3} parent=5 // pred_check_branch
      %102 = sbr.rel (%p100) target = $region20
    $region19: #{basic_conv2d.3} parent=5 // pred_region
      // Predicated region
      $region21: #{basic_conv2d.3} parent=19 // pred_check
        %p103 = pneg %p28
      $region22: #{basic_conv2d.3} parent=19 // pred_check_branch
        %105 = sbr.rel (%p103) target = $region24
      $region23: #{basic_conv2d.3} parent=19 // pred_region
        %s106 = smul.u32 32, %s8
        %p107 = scmp.lt.s32.totalorder %s106, 63
        %s108 = scalar_select %p107, %s106, 63
        %s109 = smul.addr %s108, 4
        %s110 = scalar_lea.vmem %s0, %s109
        %s111 = smul.u32 32, %s8
      $region24: #{basic_conv2d.3} parent=19 // pred_fallthru
        _
    $region20: #{basic_conv2d.3} parent=5 // pred_fallthru
      _
    %p112 = scmp.le.s32.totalorder 1, %s8
    %p113 = scmp.lt.s32.totalorder %s8, 3
    %p114 = pnand %p112, %p113
    %p115 = pneg %p114
    // Predicated region
    $region25: #{basic_conv2d.3} parent=5 // pred_check
      _
    $region26: #{basic_conv2d.3} parent=5 // pred_check_branch
      %117 = sbr.rel (%p114) target = $region28
    $region27: #{basic_conv2d.3} parent=5 // pred_region
      %s118 = ssub.s32 %s8, 1
      %s119 = smul.u32 32, %s13
      %p120 = scmp.lt.s32.totalorder %s119, 63
      %s121 = scalar_select %p120, %s119, 63
      %s122 = smul.addr %s121, 4
      %s123 = scalar_lea.vmem %s0, %s122
      %p124 = pneg %p34
      %p125 = pneg %p31
      %p126 = pneg %p55
      %p127 = pneg %p52
      %p128 = pneg %p81
      %p129 = pneg %p78
      %s130 = smul.u32 32, %s13
      %p131 = scmp.lt.s32.totalorder %s130, 63
      %s132 = scalar_select %p131, %s130, 63
      %s133 = smul.addr %s132, 8
      %s134 = scalar_lea.vmem %s2, %s133
      %s135 = smul.u32 32, %s13
      %p136 = scmp.lt.s32.totalorder %s135, 63
      %s137 = scalar_select %p136, %s135, 63
      %s138 = smul.addr %s137, 4
      %s139 = scalar_lea.vmem %s0, %s138
      %s140 = smul.u32 32, %s13
      %s141 = smul.u32 32, %s13
      %p142 = scmp.lt.s32.totalorder %s141, 63
      %s143 = scalar_select %p142, %s141, 63
      %s144 = smul.addr %s143, 8
      %s145 = scalar_lea.vmem %s2, %s144
      %s146 = smul.u32 32, %s13
      %v147 = vld [vmem:[%s1] sm:$0x1]
      %v148 = vld [vmem:[%s1 + $0x1] sm:$0x1]
      %v149 = vld [vmem:[%s139] sm:$0xf]
      %v150 = vld [vmem:[%s139 + $0x4] sm:$0xf]
      %v151 = vld [vmem:[%s139 + $0x8] sm:$0xf]
      %v152 = vld [vmem:[%s139 + $0xc] sm:$0xf]
      %v153 = vld [vmem:[%s139 + $0x10] sm:$0xf]
      %v154 = vld [vmem:[%s139 + $0x14] sm:$0xf]
      %v155 = vld [vmem:[%s139 + $0x18] sm:$0xf]
      %v156 = vld [vmem:[%s139 + $0x1c] sm:$0xf]
      %v157 = vld [vmem:[%s139 + $0x20] sm:$0xf]
      %v158 = vld [vmem:[%s139 + $0x24] sm:$0xf]
      %v159 = vld [vmem:[%s139 + $0x28] sm:$0xf]
      %v160 = vld [vmem:[%s139 + $0x2c] sm:$0xf]
      %v161 = vld [vmem:[%s139 + $0x30] sm:$0xf]
      %v162 = vld [vmem:[%s139 + $0x34] sm:$0xf]
      %v163 = vld [vmem:[%s139 + $0x38] sm:$0xf]
      %v164 = vld [vmem:[%s139 + $0x3c] sm:$0xf]
      %v165 = vld [vmem:[%s139 + $0x40] sm:$0xf]
      %v166 = vld [vmem:[%s139 + $0x44] sm:$0xf]
      %v167 = vld [vmem:[%s139 + $0x48] sm:$0xf]
      %v168 = vld [vmem:[%s139 + $0x4c] sm:$0xf]
      %v169 = vld [vmem:[%s139 + $0x50] sm:$0xf]
      %v170 = vld [vmem:[%s139 + $0x54] sm:$0xf]
      %v171 = vld [vmem:[%s139 + $0x58] sm:$0xf]
      %v172 = vld [vmem:[%s139 + $0x5c] sm:$0xf]
      %v173 = vld [vmem:[%s139 + $0x60] sm:$0xf]
      %v174 = vld [vmem:[%s139 + $0x64] sm:$0xf]
      %v175 = vld [vmem:[%s139 + $0x68] sm:$0xf]
      %v176 = vld [vmem:[%s139 + $0x6c] sm:$0xf]
      %v177 = vld [vmem:[%s139 + $0x70] sm:$0xf]
      %v178 = vld [vmem:[%s139 + $0x74] sm:$0xf]
      %v179 = vld [vmem:[%s139 + $0x78] sm:$0xf]
      %v180 = vld [vmem:[%s139 + $0x7c] sm:$0xf]
      %v181 = vunpack.c.l.bf16 %v149
      %v182 = vunpack.c.l.bf16 %v150
      %v183 = vunpack.c.l.bf16 %v151
      %v184 = vunpack.c.l.bf16 %v152
      %v185 = vunpack.c.l.bf16 %v153
      %v186 = vunpack.c.l.bf16 %v154
      %v187 = vunpack.c.l.bf16 %v155
      %v188 = vunpack.c.l.bf16 %v156
      %v189 = vunpack.c.l.bf16 %v157
      %v190 = vunpack.c.l.bf16 %v158
      %v191 = vunpack.c.l.bf16 %v159
      %v192 = vunpack.c.l.bf16 %v160
      %v193 = vunpack.c.l.bf16 %v161
      %v194 = vunpack.c.l.bf16 %v162
      %v195 = vunpack.c.l.bf16 %v163
      %v196 = vunpack.c.l.bf16 %v164
      %v197 = vunpack.c.l.bf16 %v165
      %v198 = vunpack.c.l.bf16 %v166
      %v199 = vunpack.c.l.bf16 %v167
      %v200 = vunpack.c.l.bf16 %v168
      %v201 = vunpack.c.l.bf16 %v169
      %v202 = vunpack.c.l.bf16 %v170
      %v203 = vunpack.c.l.bf16 %v171
      %v204 = vunpack.c.l.bf16 %v172
      %v205 = vunpack.c.l.bf16 %v173
      %v206 = vunpack.c.l.bf16 %v174
      %v207 = vunpack.c.l.bf16 %v175
      %v208 = vunpack.c.l.bf16 %v176
      %v209 = vunpack.c.l.bf16 %v177
      %v210 = vunpack.c.l.bf16 %v178
      %v211 = vunpack.c.l.bf16 %v179
      %v212 = vunpack.c.l.bf16 %v180
      %v213 = vlaneseq
      %v214 = vshrl.u32 %v213, 7
      %v215 = vsub.s32 0, %v214
      %v216 = vrot.slane %v147, %v215
      %v217 = vmul.f32 %v181, %v216
      %v218 = vmul.f32 %v182, %v216
      %v219 = vmul.f32 %v183, %v216
      %v220 = vmul.f32 %v184, %v216
      %v221 = vmul.f32 %v185, %v216
      %v222 = vmul.f32 %v186, %v216
      %v223 = vmul.f32 %v187, %v216
      %v224 = vmul.f32 %v188, %v216
      %v225 = vmul.f32 %v189, %v216
      %v226 = vmul.f32 %v190, %v216
      %v227 = vmul.f32 %v191, %v216
      %v228 = vmul.f32 %v192, %v216
      %v229 = vmul.f32 %v193, %v216
      %v230 = vmul.f32 %v194, %v216
      %v231 = vmul.f32 %v195, %v216
      %v232 = vmul.f32 %v196, %v216
      %v233 = vmul.f32 %v197, %v216
      %v234 = vmul.f32 %v198, %v216
      %v235 = vmul.f32 %v199, %v216
      %v236 = vmul.f32 %v200, %v216
      %v237 = vmul.f32 %v201, %v216
      %v238 = vmul.f32 %v202, %v216
      %v239 = vmul.f32 %v203, %v216
      %v240 = vmul.f32 %v204, %v216
      %v241 = vmul.f32 %v205, %v216
      %v242 = vmul.f32 %v206, %v216
      %v243 = vmul.f32 %v207, %v216
      %v244 = vmul.f32 %v208, %v216
      %v245 = vmul.f32 %v209, %v216
      %v246 = vmul.f32 %v210, %v216
      %v247 = vmul.f32 %v211, %v216
      %v248 = vmul.f32 %v212, %v216
      %v249 = vlaneseq
      %v250 = vshrl.u32 %v249, 7
      %v251 = vsub.s32 0, %v250
      %v252 = vrot.slane %v148, %v251
      %v253 = vadd.f32 %v217, %v252
      %v254 = vadd.f32 %v218, %v252
      %v255 = vadd.f32 %v219, %v252
      %v256 = vadd.f32 %v220, %v252
      %v257 = vadd.f32 %v221, %v252
      %v258 = vadd.f32 %v222, %v252
      %v259 = vadd.f32 %v223, %v252
      %v260 = vadd.f32 %v224, %v252
      %v261 = vadd.f32 %v225, %v252
      %v262 = vadd.f32 %v226, %v252
      %v263 = vadd.f32 %v227, %v252
      %v264 = vadd.f32 %v228, %v252
      %v265 = vadd.f32 %v229, %v252
      %v266 = vadd.f32 %v230, %v252
      %v267 = vadd.f32 %v231, %v252
      %v268 = vadd.f32 %v232, %v252
      %v269 = vadd.f32 %v233, %v252
      %v270 = vadd.f32 %v234, %v252
      %v271 = vadd.f32 %v235, %v252
      %v272 = vadd.f32 %v236, %v252
      %v273 = vadd.f32 %v237, %v252
      %v274 = vadd.f32 %v238, %v252
      %v275 = vadd.f32 %v239, %v252
      %v276 = vadd.f32 %v240, %v252
      %v277 = vadd.f32 %v241, %v252
      %v278 = vadd.f32 %v242, %v252
      %v279 = vadd.f32 %v243, %v252
      %v280 = vadd.f32 %v244, %v252
      %v281 = vadd.f32 %v245, %v252
      %v282 = vadd.f32 %v246, %v252
      %v283 = vadd.f32 %v247, %v252
      %v284 = vadd.f32 %v248, %v252
      %v285 = vmax.f32 %v253, 0.0
      %v286 = vmax.f32 %v254, 0.0
      %v287 = vmax.f32 %v255, 0.0
      %v288 = vmax.f32 %v256, 0.0
      %v289 = vmax.f32 %v257, 0.0
      %v290 = vmax.f32 %v258, 0.0
      %v291 = vmax.f32 %v259, 0.0
      %v292 = vmax.f32 %v260, 0.0
      %v293 = vmax.f32 %v261, 0.0
      %v294 = vmax.f32 %v262, 0.0
      %v295 = vmax.f32 %v263, 0.0
      %v296 = vmax.f32 %v264, 0.0
      %v297 = vmax.f32 %v265, 0.0
      %v298 = vmax.f32 %v266, 0.0
      %v299 = vmax.f32 %v267, 0.0
      %v300 = vmax.f32 %v268, 0.0
      %v301 = vmax.f32 %v269, 0.0
      %v302 = vmax.f32 %v270, 0.0
      %v303 = vmax.f32 %v271, 0.0
      %v304 = vmax.f32 %v272, 0.0
      %v305 = vmax.f32 %v273, 0.0
      %v306 = vmax.f32 %v274, 0.0
      %v307 = vmax.f32 %v275, 0.0
      %v308 = vmax.f32 %v276, 0.0
      %v309 = vmax.f32 %v277, 0.0
      %v310 = vmax.f32 %v278, 0.0
      %v311 = vmax.f32 %v279, 0.0
      %v312 = vmax.f32 %v280, 0.0
      %v313 = vmax.f32 %v281, 0.0
      %v314 = vmax.f32 %v282, 0.0
      %v315 = vmax.f32 %v283, 0.0
      %v316 = vmax.f32 %v284, 0.0
      %317 = vst [vmem:[%s145] sm:$0xff] %v285
      %318 = vst [vmem:[%s145 + $0x8] sm:$0xff] %v286
      %319 = vst [vmem:[%s145 + $0x10] sm:$0xff] %v287
      %320 = vst [vmem:[%s145 + $0x18] sm:$0xff] %v288
      %321 = vst [vmem:[%s145 + $0x20] sm:$0xff] %v289
      %322 = vst [vmem:[%s145 + $0x28] sm:$0xff] %v290
      %323 = vst [vmem:[%s145 + $0x30] sm:$0xff] %v291
      %324 = vst [vmem:[%s145 + $0x38] sm:$0xff] %v292
      %325 = vst [vmem:[%s145 + $0x40] sm:$0xff] %v293
      %326 = vst [vmem:[%s145 + $0x48] sm:$0xff] %v294
      %327 = vst [vmem:[%s145 + $0x50] sm:$0xff] %v295
      %328 = vst [vmem:[%s145 + $0x58] sm:$0xff] %v296
      %329 = vst [vmem:[%s145 + $0x60] sm:$0xff] %v297
      %330 = vst [vmem:[%s145 + $0x68] sm:$0xff] %v298
      %331 = vst [vmem:[%s145 + $0x70] sm:$0xff] %v299
      %332 = vst [vmem:[%s145 + $0x78] sm:$0xff] %v300
      %333 = vst [vmem:[%s145 + $0x80] sm:$0xff] %v301
      %334 = vst [vmem:[%s145 + $0x88] sm:$0xff] %v302
      %335 = vst [vmem:[%s145 + $0x90] sm:$0xff] %v303
      %336 = vst [vmem:[%s145 + $0x98] sm:$0xff] %v304
      %337 = vst [vmem:[%s145 + $0xa0] sm:$0xff] %v305
      %338 = vst [vmem:[%s145 + $0xa8] sm:$0xff] %v306
      %339 = vst [vmem:[%s145 + $0xb0] sm:$0xff] %v307
      %340 = vst [vmem:[%s145 + $0xb8] sm:$0xff] %v308
      %341 = vst [vmem:[%s145 + $0xc0] sm:$0xff] %v309
      %342 = vst [vmem:[%s145 + $0xc8] sm:$0xff] %v310
      %343 = vst [vmem:[%s145 + $0xd0] sm:$0xff] %v311
      %344 = vst [vmem:[%s145 + $0xd8] sm:$0xff] %v312
      %345 = vst [vmem:[%s145 + $0xe0] sm:$0xff] %v313
      %346 = vst [vmem:[%s145 + $0xe8] sm:$0xff] %v314
      %347 = vst [vmem:[%s145 + $0xf0] sm:$0xff] %v315
      %348 = vst [vmem:[%s145 + $0xf8] sm:$0xff] %v316
      %s349 = smul.u32 32, %s13
      %p350 = scmp.lt.s32.totalorder %s349, 63
      %s351 = scalar_select %p350, %s349, 63
      %s352 = smul.addr %s351, 8
      %s353 = scalar_lea.vmem %s2, %s352
      // Predicated region
      $region29: #{basic_conv2d.3} parent=27 // pred_check
        %p354 = pneg %p78
      $region30: #{basic_conv2d.3} parent=27 // pred_check_branch
        %356 = sbr.rel (%p354) target = $region32
      $region31: #{basic_conv2d.3} parent=27 // pred_region
        %s357 = smul.u32 32, %s13
      $region32: #{basic_conv2d.3} parent=27 // pred_fallthru
        _
    $region28: #{basic_conv2d.3} parent=5 // pred_fallthru
      _
    %p358 = scmp.le.s32.totalorder 2, %s8
    // Predicated region
    $region33: #{basic_conv2d.3} parent=5 // pred_check
      %p359 = pneg %p358
    $region34: #{basic_conv2d.3} parent=5 // pred_check_branch
      %361 = sbr.rel (%p359) target = $region36
    $region35: #{basic_conv2d.3} parent=5 // pred_region
      %s362 = ssub.s32 %s8, 2
      // Predicated region
      $region37: #{basic_conv2d.3} parent=35 // pred_check
        %p363 = pneg %p84
      $region38: #{basic_conv2d.3} parent=35 // pred_check_branch
        %365 = sbr.rel (%p363) target = $region40
      $region39: #{basic_conv2d.3} parent=35 // pred_region
        %s366 = smul.u32 32, %s14
        %p367 = scmp.lt.s32.totalorder %s366, 63
        %s368 = scalar_select %p367, %s366, 63
        %s369 = smul.addr %s368, 8
        %s370 = scalar_lea.vmem %s2, %s369
      $region40: #{basic_conv2d.3} parent=35 // pred_fallthru
        _
    $region36: #{basic_conv2d.3} parent=5 // pred_fallthru
      _
  $region6: #{basic_conv2d.3} parent=0 // loop_footer
    %s12 = sadd.s32 1, %s8
  $region7: #{basic_conv2d.3} parent=0 // loop_footer_branch
    %7 = sbr.rel target = $region3
  $region8: #{basic_conv2d.3} parent=0 // loop_exit
    _

// kernel: basic_conv2d.2
$region0: #{basic_conv2d.2}
  #allocation0 [shape = 'u32[]', space=smem, size = 0x4, offset = 0x4, fixed_abs, tag = 'smem constant byte address 0x4 - core index']
  #allocation1 [shape = 'u32[144,128]{1,0:T(1,128)}', space=vmem, size = 0x12000, scoped, tag = 'internal scratch']
  %s0 = inlined_call_operand.vmem [shape: bf16[512,128], index: 0, kind: input, shape index: {}]
  %s1 = inlined_call_operand.vmem [shape: bf16[128,128], index: 1, kind: input, shape index: {}]
  %s2 = inlined_call_operand.vmem [shape: bf16[512,128], index: 2, kind: output, shape index: {0}]
  %s3 = inlined_call_operand.vmem [shape: f32[16,128], index: 3, kind: output, shape index: {1}]
  %4 = xla_tuple %s2, %s3
  %s5 = sld [smem:[#allocation0]]
  $region49: #{basic_conv2d.2} parent=0
    _
  %s7 = ssub.s32 1, %s5
  %s8 = scalar_select 0, %s7, %s5
  loop: start=0, step=1, limit=4
  $region2: #{basic_conv2d.2} parent=0 // loop_pre_header
    _
  $region3: #{basic_conv2d.2} parent=0 // loop_header
    %s10 = sphi 0, %s14
    %p11 = scmp.ge.s32.totalorder %s10, 4
    %s20 = sphi 0, %s22
    %s23 = sphi 0, %s20
    %s24 = sphi 0, %s23
    %s40 = sphi 0, %s24
    %s44 = sphi 0, %s44
    %s46 = sphi 0, %s44
    %s47 = sphi 0, %s46
    %s61 = sphi 0, %s47
    %s67 = sphi 0, %s69
    %s70 = sphi 0, %s67
    %s71 = sphi 0, %s70
    %s87 = sphi 0, %s71
    %s93 = sphi 0, %s95
    %s96 = sphi 0, %s93
    %s97 = sphi 0, %s96
    %s113 = sphi 0, %s97
  $region4: #{basic_conv2d.2} parent=0 // loop_header_branch
    %13 = sbr.rel (%p11) target = $region8
  $region5: #{basic_conv2d.2} parent=0 // loop_body
    %s15 = ssub.s32 %s10, 1
    %s16 = ssub.s32 %s10, 2
    %s17 = sadd.s32 %s10, 1
    %s18 = ssub.s32 %s10, %s17
    %p19 = scmp.eq.s32.totalorder %s18, 0
    %s21 = sadd.s32 %s20, 1
    %s22 = scalar_select %p19, %s20, %s21
    %p25 = pneg %p19
    %p26 = scmp.eq.s32.totalorder %s10, 1
    %p27 = por %p25, %p26
    %p28 = scmp.ne.s32.totalorder %s20, %s23
    %p29 = scmp.eq.s32.totalorder %s10, 0
    %p30 = por %p28, %p29
    %p31 = scmp.ne.s32.totalorder %s20, %s23
    %p32 = scmp.eq.s32.totalorder %s15, 1
    %p33 = por %p31, %p32
    %p34 = scmp.ne.s32.totalorder %s23, %s24
    %p35 = scmp.eq.s32.totalorder %s15, 0
    %p36 = por %p34, %p35
    %p37 = scmp.ne.s32.totalorder %s23, %s24
    %p38 = scmp.eq.s32.totalorder %s16, 1
    %p39 = por %p37, %p38
    %p41 = scmp.ne.s32.totalorder %s24, %s40
    %p42 = scmp.eq.s32.totalorder %s16, 0
    %p43 = por %p41, %p42
    %s45 = sadd.s32 %s44, 1
    %p48 = scmp.eq.s32.totalorder %s10, 1
    %p49 = scmp.ne.s32.totalorder %s44, %s46
    %p50 = scmp.eq.s32.totalorder %s10, 0
    %p51 = por %p49, %p50
    %p52 = scmp.ne.s32.totalorder %s44, %s46
    %p53 = scmp.eq.s32.totalorder %s15, 1
    %p54 = por %p52, %p53
    %p55 = scmp.ne.s32.totalorder %s46, %s47
    %p56 = scmp.eq.s32.totalorder %s15, 0
    %p57 = por %p55, %p56
    %p58 = scmp.ne.s32.totalorder %s46, %s47
    %p59 = scmp.eq.s32.totalorder %s16, 1
    %p60 = por %p58, %p59
    %p62 = scmp.ne.s32.totalorder %s47, %s61
    %p63 = scmp.eq.s32.totalorder %s16, 0
    %p64 = por %p62, %p63
    %s65 = ssub.s32 %s10, %s17
    %p66 = scmp.eq.s32.totalorder %s65, 0
    %s68 = sadd.s32 %s67, 1
    %s69 = scalar_select %p66, %s67, %s68
    %p72 = pneg %p66
    %p73 = scmp.eq.s32.totalorder %s10, 1
    %p74 = por %p72, %p73
    %p75 = scmp.ne.s32.totalorder %s67, %s70
    %p76 = scmp.eq.s32.totalorder %s10, 0
    %p77 = por %p75, %p76
    %p78 = scmp.ne.s32.totalorder %s67, %s70
    %p79 = scmp.eq.s32.totalorder %s15, 1
    %p80 = por %p78, %p79
    %p81 = scmp.ne.s32.totalorder %s70, %s71
    %p82 = scmp.eq.s32.totalorder %s15, 0
    %p83 = por %p81, %p82
    %p84 = scmp.ne.s32.totalorder %s70, %s71
    %p85 = scmp.eq.s32.totalorder %s16, 1
    %p86 = por %p84, %p85
    %p88 = scmp.ne.s32.totalorder %s71, %s87
    %p89 = scmp.eq.s32.totalorder %s16, 0
    %p90 = por %p88, %p89
    %s91 = ssub.s32 %s10, %s17
    %p92 = scmp.eq.s32.totalorder %s91, 0
    %s94 = sadd.s32 %s93, 1
    %s95 = scalar_select %p92, %s93, %s94
    %p98 = pneg %p92
    %p99 = scmp.eq.s32.totalorder %s10, 1
    %p100 = por %p98, %p99
    %p101 = scmp.ne.s32.totalorder %s93, %s96
    %p102 = scmp.eq.s32.totalorder %s10, 0
    %p103 = por %p101, %p102
    %p104 = scmp.ne.s32.totalorder %s93, %s96
    %p105 = scmp.eq.s32.totalorder %s15, 1
    %p106 = por %p104, %p105
    %p107 = scmp.ne.s32.totalorder %s96, %s97
    %p108 = scmp.eq.s32.totalorder %s15, 0
    %p109 = por %p107, %p108
    %p110 = scmp.ne.s32.totalorder %s96, %s97
    %p111 = scmp.eq.s32.totalorder %s16, 1
    %p112 = por %p110, %p111
    %p114 = scmp.ne.s32.totalorder %s97, %s113
    %p115 = scmp.eq.s32.totalorder %s16, 0
    %p116 = por %p114, %p115
    %p117 = scmp.le.s32.totalorder 1, %s10
    %p118 = scmp.lt.s32.totalorder %s10, 3
    %p119 = pnand %p117, %p118
    %p120 = pneg %p119
    // Predicated region
    $region9: #{basic_conv2d.2} parent=5 // pred_check
      _
    $region10: #{basic_conv2d.2} parent=5 // pred_check_branch
      %122 = sbr.rel (%p119) target = $region12
    $region11: #{basic_conv2d.2} parent=5 // pred_region
      %s123 = ssub.s32 %s10, 1
      // Predicated region
      $region13: #{basic_conv2d.2} parent=11 // pred_check
        %p124 = pneg %p57
      $region14: #{basic_conv2d.2} parent=11 // pred_check_branch
        %126 = sbr.rel (%p124) target = $region16
      $region15: #{basic_conv2d.2} parent=11 // pred_region
        _
      $region16: #{basic_conv2d.2} parent=11 // pred_fallthru
        _
    $region12: #{basic_conv2d.2} parent=5 // pred_fallthru
      _
    %p127 = scmp.lt.s32.totalorder %s10, 2
    // Predicated region
    $region17: #{basic_conv2d.2} parent=5 // pred_check
      %p128 = pneg %p127
    $region18: #{basic_conv2d.2} parent=5 // pred_check_branch
      %130 = sbr.rel (%p128) target = $region20
    $region19: #{basic_conv2d.2} parent=5 // pred_region
      // Predicated region
      $region21: #{basic_conv2d.2} parent=19 // pred_check
        %p131 = pneg %p30
      $region22: #{basic_conv2d.2} parent=19 // pred_check_branch
        %133 = sbr.rel (%p131) target = $region24
      $region23: #{basic_conv2d.2} parent=19 // pred_region
        %s134 = smul.u32 32, %s10
        %p135 = scmp.lt.s32.totalorder %s134, 63
        %s136 = scalar_select %p135, %s134, 63
        %s137 = smul.addr %s136, 4
        %s138 = scalar_lea.vmem %s0, %s137
        %s139 = smul.u32 32, %s10
      $region24: #{basic_conv2d.2} parent=19 // pred_fallthru
        _
    $region20: #{basic_conv2d.2} parent=5 // pred_fallthru
      _
    %p140 = scmp.le.s32.totalorder 1, %s10
    %p141 = scmp.lt.s32.totalorder %s10, 3
    %p142 = pnand %p140, %p141
    %p143 = pneg %p142
    // Predicated region
    $region25: #{basic_conv2d.2} parent=5 // pred_check
      _
    $region26: #{basic_conv2d.2} parent=5 // pred_check_branch
      %145 = sbr.rel (%p142) target = $region28
    $region27: #{basic_conv2d.2} parent=5 // pred_region
      %s146 = ssub.s32 %s10, 1
      %s147 = smul.u32 32, %s15
      %p148 = scmp.lt.s32.totalorder %s147, 63
      %s149 = scalar_select %p148, %s147, 63
      %s150 = smul.addr %s149, 4
      %s151 = scalar_lea.vmem %s0, %s150
      %p152 = pneg %p36
      %p153 = pneg %p33
      %p154 = pneg %p57
      %p155 = pneg %p54
      %p156 = pneg %p83
      %p157 = pneg %p80
      %s158 = smul.u32 32, %s15
      %p159 = scmp.lt.s32.totalorder %s158, 63
      %s160 = scalar_select %p159, %s158, 63
      %s161 = smul.addr %s160, 4
      %s162 = scalar_lea.vmem %s2, %s161
      %p163 = pneg %p109
      %p164 = pneg %p106
      %p165 = scmp.lt.s32.totalorder %s15, 1
      %s166 = scalar_select %p165, %s15, 1
      %s167 = smul.addr %s166, 8
      %s168 = scalar_lea.vmem %s3, %s167
      %s169 = smul.u32 32, %s15
      %p170 = scmp.lt.s32.totalorder %s169, 63
      %s171 = scalar_select %p170, %s169, 63
      %s172 = smul.addr %s171, 4
      %s173 = scalar_lea.vmem %s0, %s172
      %s174 = smul.u32 32, %s15
      %s175 = smul.u32 32, %s15
      %p176 = scmp.lt.s32.totalorder %s175, 63
      %s177 = scalar_select %p176, %s175, 63
      %s178 = smul.addr %s177, 4
      %s179 = scalar_lea.vmem %s2, %s178
      %s180 = smul.u32 32, %s15
      %p181 = scmp.lt.s32.totalorder %s15, 1
      %s182 = scalar_select %p181, %s15, 1
      %s183 = smul.addr %s182, 8
      %s184 = scalar_lea.vmem %s3, %s183
      %v186 = vld [vmem:[%s173] sm:$0xf]
      %v187 = vld [vmem:[%s173 + $0x4] sm:$0xf]
      %v188 = vld [vmem:[%s173 + $0x8] sm:$0xf]
      %v189 = vld [vmem:[%s173 + $0xc] sm:$0xf]
      %v190 = vld [vmem:[%s173 + $0x10] sm:$0xf]
      %v191 = vld [vmem:[%s173 + $0x14] sm:$0xf]
      %v192 = vld [vmem:[%s173 + $0x18] sm:$0xf]
      %v193 = vld [vmem:[%s173 + $0x1c] sm:$0xf]
      %v194 = vld [vmem:[%s173 + $0x20] sm:$0xf]
      %v195 = vld [vmem:[%s173 + $0x24] sm:$0xf]
      %v196 = vld [vmem:[%s173 + $0x28] sm:$0xf]
      %v197 = vld [vmem:[%s173 + $0x2c] sm:$0xf]
      %v198 = vld [vmem:[%s173 + $0x30] sm:$0xf]
      %v199 = vld [vmem:[%s173 + $0x34] sm:$0xf]
      %v200 = vld [vmem:[%s173 + $0x38] sm:$0xf]
      %v201 = vld [vmem:[%s173 + $0x3c] sm:$0xf]
      %v202 = vld [vmem:[%s173 + $0x40] sm:$0xf]
      %v203 = vld [vmem:[%s173 + $0x44] sm:$0xf]
      %v204 = vld [vmem:[%s173 + $0x48] sm:$0xf]
      %v205 = vld [vmem:[%s173 + $0x4c] sm:$0xf]
      %v206 = vld [vmem:[%s173 + $0x50] sm:$0xf]
      %v207 = vld [vmem:[%s173 + $0x54] sm:$0xf]
      %v208 = vld [vmem:[%s173 + $0x58] sm:$0xf]
      %v209 = vld [vmem:[%s173 + $0x5c] sm:$0xf]
      %v210 = vld [vmem:[%s173 + $0x60] sm:$0xf]
      %v211 = vld [vmem:[%s173 + $0x64] sm:$0xf]
      %v212 = vld [vmem:[%s173 + $0x68] sm:$0xf]
      %v213 = vld [vmem:[%s173 + $0x6c] sm:$0xf]
      %v214 = vld [vmem:[%s173 + $0x70] sm:$0xf]
      %v215 = vld [vmem:[%s173 + $0x74] sm:$0xf]
      %v216 = vld [vmem:[%s173 + $0x78] sm:$0xf]
      %v217 = vld [vmem:[%s173 + $0x7c] sm:$0xf]
      %v218 = vld [vmem:[%s1] sm:$0xf]
      %v219 = vld [vmem:[%s1 + $0x4] sm:$0xf]
      %v220 = vld [vmem:[%s1 + $0x8] sm:$0xf]
      %v221 = vld [vmem:[%s1 + $0xc] sm:$0xf]
      %v222 = vld [vmem:[%s1 + $0x10] sm:$0xf]
      %v223 = vld [vmem:[%s1 + $0x14] sm:$0xf]
      %v224 = vld [vmem:[%s1 + $0x18] sm:$0xf]
      %v225 = vld [vmem:[%s1 + $0x1c] sm:$0xf]
      %v226 = vld [vmem:[%s1 + $0x20] sm:$0xf]
      %v227 = vld [vmem:[%s1 + $0x24] sm:$0xf]
      %v228 = vld [vmem:[%s1 + $0x28] sm:$0xf]
      %v229 = vld [vmem:[%s1 + $0x2c] sm:$0xf]
      %v230 = vld [vmem:[%s1 + $0x30] sm:$0xf]
      %v231 = vld [vmem:[%s1 + $0x34] sm:$0xf]
      %v232 = vld [vmem:[%s1 + $0x38] sm:$0xf]
      %v233 = vld [vmem:[%s1 + $0x3c] sm:$0xf]
      %v266 = vunpack.c.l.b16 %v186
      %v267 = vunpack.c.l.b16 %v187
      %v268 = vunpack.c.l.b16 %v188
      %v269 = vunpack.c.l.b16 %v189
      %v270 = vunpack.c.l.b16 %v190
      %v271 = vunpack.c.l.b16 %v191
      %v272 = vunpack.c.l.b16 %v192
      %v273 = vunpack.c.l.b16 %v193
      %v274 = vunpack.c.l.b16 %v194
      %v275 = vunpack.c.l.b16 %v195
      %v276 = vunpack.c.l.b16 %v196
      %v277 = vunpack.c.l.b16 %v197
      %v278 = vunpack.c.l.b16 %v198
      %v279 = vunpack.c.l.b16 %v199
      %v280 = vunpack.c.l.b16 %v200
      %v281 = vunpack.c.l.b16 %v201
      %v282 = vunpack.c.l.b16 %v202
      %v283 = vunpack.c.l.b16 %v203
      %v284 = vunpack.c.l.b16 %v204
      %v285 = vunpack.c.l.b16 %v205
      %v286 = vunpack.c.l.b16 %v206
      %v287 = vunpack.c.l.b16 %v207
      %v288 = vunpack.c.l.b16 %v208
      %v289 = vunpack.c.l.b16 %v209
      %v290 = vunpack.c.l.b16 %v210
      %v291 = vunpack.c.l.b16 %v211
      %v292 = vunpack.c.l.b16 %v212
      %v293 = vunpack.c.l.b16 %v213
      %v294 = vunpack.c.l.b16 %v214
      %v295 = vunpack.c.l.b16 %v215
      %v296 = vunpack.c.l.b16 %v216
      %v297 = vunpack.c.l.b16 %v217
      %v298 = vpack.c.b16 %v267, %v266
      %v299 = vpack.c.b16 %v269, %v268
      %v300 = vpack.c.b16 %v271, %v270
      %v301 = vpack.c.b16 %v273, %v272
      %v302 = vpack.c.b16 %v275, %v274
      %v303 = vpack.c.b16 %v277, %v276
      %v304 = vpack.c.b16 %v279, %v278
      %v305 = vpack.c.b16 %v281, %v280
      %v306 = vpack.c.b16 %v283, %v282
      %v307 = vpack.c.b16 %v285, %v284
      %v308 = vpack.c.b16 %v287, %v286
      %v309 = vpack.c.b16 %v289, %v288
      %v310 = vpack.c.b16 %v291, %v290
      %v311 = vpack.c.b16 %v293, %v292
      %v312 = vpack.c.b16 %v295, %v294
      %v313 = vpack.c.b16 %v297, %v296
      %v346 = vunpack.c.l.b16 %v218
      %v347 = vunpack.c.l.b16 %v219
      %v348 = vunpack.c.l.b16 %v220
      %v349 = vunpack.c.l.b16 %v221
      %v350 = vunpack.c.l.b16 %v222
      %v351 = vunpack.c.l.b16 %v223
      %v352 = vunpack.c.l.b16 %v224
      %v353 = vunpack.c.l.b16 %v225
      %v354 = vunpack.c.l.b16 %v226
      %v355 = vunpack.c.l.b16 %v227
      %v356 = vunpack.c.l.b16 %v228
      %v357 = vunpack.c.l.b16 %v229
      %v358 = vunpack.c.l.b16 %v230
      %v359 = vunpack.c.l.b16 %v231
      %v360 = vunpack.c.l.b16 %v232
      %v361 = vunpack.c.l.b16 %v233
      %v362 = vpack.c.b16 %v347, %v346
      %v363 = vpack.c.b16 %v349, %v348
      %v364 = vpack.c.b16 %v351, %v350
      %v365 = vpack.c.b16 %v353, %v352
      %v366 = vpack.c.b16 %v355, %v354
      %v367 = vpack.c.b16 %v357, %v356
      %v368 = vpack.c.b16 %v359, %v358
      %v369 = vpack.c.b16 %v361, %v360
      %378 = vmatprep.subr.bf16.mxu0 0
      %379 = vmatpush1.bf16.msra.mxu0 %v362
      %380 = vmatprep.subr.bf16.mxu0 0
      %381 = vmatpush1.bf16.msra.mxu0 %v363
      %382 = vmatprep.subr.bf16.mxu0 0
      %383 = vmatpush1.bf16.msra.mxu0 %v364
      %384 = vmatprep.subr.bf16.mxu0 0
      %385 = vmatpush1.bf16.msra.mxu0 %v365
      %386 = vmatprep.subr.bf16.mxu0 0
      %387 = vmatpush1.bf16.msra.mxu0 %v366
      %388 = vmatprep.subr.bf16.mxu0 0
      %389 = vmatpush1.bf16.msra.mxu0 %v367
      %390 = vmatprep.subr.bf16.mxu0 0
      %391 = vmatpush1.bf16.msra.mxu0 %v368
      %392 = vmatprep.subr.bf16.mxu0 0
      %393 = vmatpush1.bf16.msra.mxu0 %v369
      %394 = vmatprep.subr.bf16.mxu0 0
      %395 = vmatpush1.bf16.msra.mxu0 0
      %396 = vmatprep.subr.bf16.mxu0 0
      %397 = vmatpush1.bf16.msra.mxu0 0
      %398 = vmatprep.subr.bf16.mxu0 0
      %399 = vmatpush1.bf16.msra.mxu0 0
      %400 = vmatprep.subr.bf16.mxu0 0
      %401 = vmatpush1.bf16.msra.mxu0 0
      %402 = vmatprep.subr.bf16.mxu0 0
      %403 = vmatpush1.bf16.msra.mxu0 0
      %404 = vmatprep.subr.bf16.mxu0 0
      %405 = vmatpush1.bf16.msra.mxu0 0
      %406 = vmatprep.subr.bf16.mxu0 0
      %407 = vmatpush1.bf16.msra.mxu0 0
      %408 = vmatprep.subr.bf16.mxu0 0
      %409 = vmatpush1.bf16.msra.mxu0 0
      %410 = vmatprep.mubr.bf16.mxu0 0
      %411 = vmatmul.mubr.bf16.gmra.mrb[0].mxu0 %v298
      %v412 = vpop.f32.mrb[0].mxu0
      %v413 = vadd.f32 0.0, %v412
      %v414 = vpop.f32.mrb[0].mxu0
      %v415 = vpop.f32.mrb[0].mxu0
      %v416 = vadd.f32 0.0, %v415
      %v417 = vpop.f32.mrb[0].mxu0
      %418 = vmatprep.mubr.bf16.mxu0 0
      %419 = vmatmul.mubr.bf16.gmra.mrb[0].mxu0 %v299
      %v420 = vpop.f32.mrb[0].mxu0
      %v421 = vadd.f32 0.0, %v420
      %v422 = vpop.f32.mrb[0].mxu0
      %v423 = vpop.f32.mrb[0].mxu0
      %v424 = vadd.f32 0.0, %v423
      %v425 = vpop.f32.mrb[0].mxu0
      %426 = vmatprep.mubr.bf16.mxu0 0
      %427 = vmatmul.mubr.bf16.gmra.mrb[0].mxu0 %v300
      %v428 = vpop.f32.mrb[0].mxu0
      %v429 = vadd.f32 0.0, %v428
      %v430 = vpop.f32.mrb[0].mxu0
      %v431 = vpop.f32.mrb[0].mxu0
      %v432 = vadd.f32 0.0, %v431
      %v433 = vpop.f32.mrb[0].mxu0
      %434 = vmatprep.mubr.bf16.mxu0 0
      %435 = vmatmul.mubr.bf16.gmra.mrb[0].mxu0 %v301
      %v436 = vpop.f32.mrb[0].mxu0
      %v437 = vadd.f32 0.0, %v436
      %v438 = vpop.f32.mrb[0].mxu0
      %v439 = vpop.f32.mrb[0].mxu0
      %v440 = vadd.f32 0.0, %v439
      %v441 = vpop.f32.mrb[0].mxu0
      %442 = vmatprep.mubr.bf16.mxu0 0
      %443 = vmatmul.mubr.bf16.gmra.mrb[0].mxu0 %v302
      %v444 = vpop.f32.mrb[0].mxu0
      %v445 = vadd.f32 0.0, %v444
      %v446 = vpop.f32.mrb[0].mxu0
      %v447 = vpop.f32.mrb[0].mxu0
      %v448 = vadd.f32 0.0, %v447
      %v449 = vpop.f32.mrb[0].mxu0
      %450 = vmatprep.mubr.bf16.mxu0 0
      %451 = vmatmul.mubr.bf16.gmra.mrb[0].mxu0 %v303
      %v452 = vpop.f32.mrb[0].mxu0
      %v453 = vadd.f32 0.0, %v452
      %v454 = vpop.f32.mrb[0].mxu0
      %v455 = vpop.f32.mrb[0].mxu0
      %v456 = vadd.f32 0.0, %v455
      %v457 = vpop.f32.mrb[0].mxu0
      %458 = vmatprep.mubr.bf16.mxu0 0
      %459 = vmatmul.mubr.bf16.gmra.mrb[0].mxu0 %v304
      %v460 = vpop.f32.mrb[0].mxu0
      %v461 = vadd.f32 0.0, %v460
      %v462 = vpop.f32.mrb[0].mxu0
      %v463 = vpop.f32.mrb[0].mxu0
      %v464 = vadd.f32 0.0, %v463
      %v465 = vpop.f32.mrb[0].mxu0
      %466 = vmatprep.mubr.bf16.mxu0 0
      %467 = vmatmul.mubr.bf16.gmra.mrb[0].mxu0 %v305
      %v468 = vpop.f32.mrb[0].mxu0
      %v469 = vadd.f32 0.0, %v468
      %v470 = vpop.f32.mrb[0].mxu0
      %v471 = vpop.f32.mrb[0].mxu0
      %v472 = vadd.f32 0.0, %v471
      %v473 = vpop.f32.mrb[0].mxu0
      %474 = vmatprep.mubr.bf16.mxu0 0
      %475 = vmatmul.mubr.bf16.gmra.mrb[0].mxu0 %v306
      %v476 = vpop.f32.mrb[0].mxu0
      %v477 = vadd.f32 0.0, %v476
      %v478 = vpop.f32.mrb[0].mxu0
      %v479 = vpop.f32.mrb[0].mxu0
      %v480 = vadd.f32 0.0, %v479
      %v481 = vpop.f32.mrb[0].mxu0
      %482 = vmatprep.mubr.bf16.mxu0 0
      %483 = vmatmul.mubr.bf16.gmra.mrb[0].mxu0 %v307
      %v484 = vpop.f32.mrb[0].mxu0
      %v485 = vadd.f32 0.0, %v484
      %v486 = vpop.f32.mrb[0].mxu0
      %v487 = vpop.f32.mrb[0].mxu0
      %v488 = vadd.f32 0.0, %v487
      %v489 = vpop.f32.mrb[0].mxu0
      %490 = vmatprep.mubr.bf16.mxu0 0
      %491 = vmatmul.mubr.bf16.gmra.mrb[0].mxu0 %v308
      %v492 = vpop.f32.mrb[0].mxu0
      %v493 = vadd.f32 0.0, %v492
      %v494 = vpop.f32.mrb[0].mxu0
      %v495 = vpop.f32.mrb[0].mxu0
      %v496 = vadd.f32 0.0, %v495
      %v497 = vpop.f32.mrb[0].mxu0
      %498 = vmatprep.mubr.bf16.mxu0 0
      %499 = vmatmul.mubr.bf16.gmra.mrb[0].mxu0 %v309
      %v500 = vpop.f32.mrb[0].mxu0
      %v501 = vadd.f32 0.0, %v500
      %v502 = vpop.f32.mrb[0].mxu0
      %v503 = vpop.f32.mrb[0].mxu0
      %v504 = vadd.f32 0.0, %v503
      %v505 = vpop.f32.mrb[0].mxu0
      %506 = vmatprep.mubr.bf16.mxu0 0
      %507 = vmatmul.mubr.bf16.gmra.mrb[0].mxu0 %v310
      %v508 = vpop.f32.mrb[0].mxu0
      %v509 = vadd.f32 0.0, %v508
      %v510 = vpop.f32.mrb[0].mxu0
      %v511 = vpop.f32.mrb[0].mxu0
      %v512 = vadd.f32 0.0, %v511
      %v513 = vpop.f32.mrb[0].mxu0
      %514 = vmatprep.mubr.bf16.mxu0 0
      %515 = vmatmul.mubr.bf16.gmra.mrb[0].mxu0 %v311
      %v516 = vpop.f32.mrb[0].mxu0
      %v517 = vadd.f32 0.0, %v516
      %v518 = vpop.f32.mrb[0].mxu0
      %v519 = vpop.f32.mrb[0].mxu0
      %v520 = vadd.f32 0.0, %v519
      %v521 = vpop.f32.mrb[0].mxu0
      %522 = vmatprep.mubr.bf16.mxu0 0
      %523 = vmatmul.mubr.bf16.gmra.mrb[0].mxu0 %v312
      %v524 = vpop.f32.mrb[0].mxu0
      %v525 = vadd.f32 0.0, %v524
      %v526 = vpop.f32.mrb[0].mxu0
      %v527 = vpop.f32.mrb[0].mxu0
      %v528 = vadd.f32 0.0, %v527
      %v529 = vpop.f32.mrb[0].mxu0
      %530 = vmatprep.mubr.bf16.mxu0 0
      %531 = vmatmul.mubr.bf16.gmra.mrb[0].mxu0 %v313
      %v532 = vpop.f32.mrb[0].mxu0
      %v533 = vadd.f32 0.0, %v532
      %v534 = vpop.f32.mrb[0].mxu0
      %v535 = vpop.f32.mrb[0].mxu0
      %v536 = vadd.f32 0.0, %v535
      %v537 = vpop.f32.mrb[0].mxu0
      %538 = vdwg.mxu0
      %v539 = vadd.f32 %v413, %v416
      %v540 = vadd.f32 %v539, %v421
      %v541 = vadd.f32 %v540, %v424
      %v542 = vadd.f32 %v541, %v429
      %v543 = vadd.f32 %v542, %v432
      %v544 = vadd.f32 %v543, %v437
      %v545 = vadd.f32 %v544, %v440
      %v546 = vadd.f32 %v545, %v445
      %v547 = vadd.f32 %v546, %v448
      %v548 = vadd.f32 %v547, %v453
      %v549 = vadd.f32 %v548, %v456
      %v550 = vadd.f32 %v549, %v461
      %v551 = vadd.f32 %v550, %v464
      %v552 = vadd.f32 %v551, %v469
      %v553 = vadd.f32 %v552, %v472
      %v554 = vadd.f32 %v553, %v477
      %v555 = vadd.f32 %v554, %v480
      %v556 = vadd.f32 %v555, %v485
      %v557 = vadd.f32 %v556, %v488
      %v558 = vadd.f32 %v557, %v493
      %v559 = vadd.f32 %v558, %v496
      %v560 = vadd.f32 %v559, %v501
      %v561 = vadd.f32 %v560, %v504
      %v562 = vadd.f32 %v561, %v509
      %v563 = vadd.f32 %v562, %v512
      %v564 = vadd.f32 %v563, %v517
      %v565 = vadd.f32 %v564, %v520
      %v566 = vadd.f32 %v565, %v525
      %v567 = vadd.f32 %v566, %v528
      %v568 = vadd.f32 %v567, %v533
      %v569 = vadd.f32 %v568, %v536
      %v570 = vrot.slane %v569, 4
      %v571 = vadd.f32 %v569, %v570
      %v572 = vrot.slane %v571, 2
      %v573 = vadd.f32 %v571, %v572
      %v574 = vrot.slane %v573, 1
      %v575 = vadd.f32 %v573, %v574
      %576 = vst [vmem:[%s184] sm:$0x1] %v575
      %v577 = vmul.f32 %v413, %v413
      %v578 = vmul.f32 %v416, %v416
      %v579 = vmul.f32 %v421, %v421
      %v580 = vmul.f32 %v424, %v424
      %v581 = vmul.f32 %v429, %v429
      %v582 = vmul.f32 %v432, %v432
      %v583 = vmul.f32 %v437, %v437
      %v584 = vmul.f32 %v440, %v440
      %v585 = vmul.f32 %v445, %v445
      %v586 = vmul.f32 %v448, %v448
      %v587 = vmul.f32 %v453, %v453
      %v588 = vmul.f32 %v456, %v456
      %v589 = vmul.f32 %v461, %v461
      %v590 = vmul.f32 %v464, %v464
      %v591 = vmul.f32 %v469, %v469
      %v592 = vmul.f32 %v472, %v472
      %v593 = vmul.f32 %v477, %v477
      %v594 = vmul.f32 %v480, %v480
      %v595 = vmul.f32 %v485, %v485
      %v596 = vmul.f32 %v488, %v488
      %v597 = vmul.f32 %v493, %v493
      %v598 = vmul.f32 %v496, %v496
      %v599 = vmul.f32 %v501, %v501
      %v600 = vmul.f32 %v504, %v504
      %v601 = vmul.f32 %v509, %v509
      %v602 = vmul.f32 %v512, %v512
      %v603 = vmul.f32 %v517, %v517
      %v604 = vmul.f32 %v520, %v520
      %v605 = vmul.f32 %v525, %v525
      %v606 = vmul.f32 %v528, %v528
      %v607 = vmul.f32 %v533, %v533
      %v608 = vmul.f32 %v536, %v536
      %v609 = vadd.f32 %v577, %v578
      %v610 = vadd.f32 %v609, %v579
      %v611 = vadd.f32 %v610, %v580
      %v612 = vadd.f32 %v611, %v581
      %v613 = vadd.f32 %v612, %v582
      %v614 = vadd.f32 %v613, %v583
      %v615 = vadd.f32 %v614, %v584
      %v616 = vadd.f32 %v615, %v585
      %v617 = vadd.f32 %v616, %v586
      %v618 = vadd.f32 %v617, %v587
      %v619 = vadd.f32 %v618, %v588
      %v620 = vadd.f32 %v619, %v589
      %v621 = vadd.f32 %v620, %v590
      %v622 = vadd.f32 %v621, %v591
      %v623 = vadd.f32 %v622, %v592
      %v624 = vadd.f32 %v623, %v593
      %v625 = vadd.f32 %v624, %v594
      %v626 = vadd.f32 %v625, %v595
      %v627 = vadd.f32 %v626, %v596
      %v628 = vadd.f32 %v627, %v597
      %v629 = vadd.f32 %v628, %v598
      %v630 = vadd.f32 %v629, %v599
      %v631 = vadd.f32 %v630, %v600
      %v632 = vadd.f32 %v631, %v601
      %v633 = vadd.f32 %v632, %v602
      %v634 = vadd.f32 %v633, %v603
      %v635 = vadd.f32 %v634, %v604
      %v636 = vadd.f32 %v635, %v605
      %v637 = vadd.f32 %v636, %v606
      %v638 = vadd.f32 %v637, %v607
      %v639 = vadd.f32 %v638, %v608
      %v640 = vrot.slane %v639, 4
      %v641 = vadd.f32 %v639, %v640
      %v642 = vrot.slane %v641, 2
      %v643 = vadd.f32 %v641, %v642
      %v644 = vrot.slane %v643, 1
      %v645 = vadd.f32 %v643, %v644
      %646 = vst [vmem:[%s184 + $0x1] sm:$0x1] %v645
      %v647 = vpack.c.bf16 %v416, %v413
      %v648 = vpack.c.bf16 %v424, %v421
      %v649 = vpack.c.bf16 %v432, %v429
      %v650 = vpack.c.bf16 %v440, %v437
      %v651 = vpack.c.bf16 %v448, %v445
      %v652 = vpack.c.bf16 %v456, %v453
      %v653 = vpack.c.bf16 %v464, %v461
      %v654 = vpack.c.bf16 %v472, %v469
      %v655 = vpack.c.bf16 %v480, %v477
      %v656 = vpack.c.bf16 %v488, %v485
      %v657 = vpack.c.bf16 %v496, %v493
      %v658 = vpack.c.bf16 %v504, %v501
      %v659 = vpack.c.bf16 %v512, %v509
      %v660 = vpack.c.bf16 %v520, %v517
      %v661 = vpack.c.bf16 %v528, %v525
      %v662 = vpack.c.bf16 %v536, %v533
      %v679 = vunpack.c.l.b16 %v647
      %v680 = vunpack.c.h.b16 %v647
      %v681 = vunpack.c.l.b16 %v648
      %v682 = vunpack.c.h.b16 %v648
      %v683 = vunpack.c.l.b16 %v649
      %v684 = vunpack.c.h.b16 %v649
      %v685 = vunpack.c.l.b16 %v650
      %v686 = vunpack.c.h.b16 %v650
      %v687 = vunpack.c.l.b16 %v651
      %v688 = vunpack.c.h.b16 %v651
      %v689 = vunpack.c.l.b16 %v652
      %v690 = vunpack.c.h.b16 %v652
      %v691 = vunpack.c.l.b16 %v653
      %v692 = vunpack.c.h.b16 %v653
      %v693 = vunpack.c.l.b16 %v654
      %v694 = vunpack.c.h.b16 %v654
      %v695 = vunpack.c.l.b16 %v655
      %v696 = vunpack.c.h.b16 %v655
      %v697 = vunpack.c.l.b16 %v656
      %v698 = vunpack.c.h.b16 %v656
      %v699 = vunpack.c.l.b16 %v657
      %v700 = vunpack.c.h.b16 %v657
      %v701 = vunpack.c.l.b16 %v658
      %v702 = vunpack.c.h.b16 %v658
      %v703 = vunpack.c.l.b16 %v659
      %v704 = vunpack.c.h.b16 %v659
      %v705 = vunpack.c.l.b16 %v660
      %v706 = vunpack.c.h.b16 %v660
      %v707 = vunpack.c.l.b16 %v661
      %v708 = vunpack.c.h.b16 %v661
      %v709 = vunpack.c.l.b16 %v662
      %v710 = vunpack.c.h.b16 %v662
      %v711 = vpack.c.b16 %v679, %v679
      %v712 = vpack.c.b16 %v680, %v680
      %v713 = vpack.c.b16 %v681, %v681
      %v714 = vpack.c.b16 %v682, %v682
      %v715 = vpack.c.b16 %v683, %v683
      %v716 = vpack.c.b16 %v684, %v684
      %v717 = vpack.c.b16 %v685, %v685
      %v718 = vpack.c.b16 %v686, %v686
      %v719 = vpack.c.b16 %v687, %v687
      %v720 = vpack.c.b16 %v688, %v688
      %v721 = vpack.c.b16 %v689, %v689
      %v722 = vpack.c.b16 %v690, %v690
      %v723 = vpack.c.b16 %v691, %v691
      %v724 = vpack.c.b16 %v692, %v692
      %v725 = vpack.c.b16 %v693, %v693
      %v726 = vpack.c.b16 %v694, %v694
      %v727 = vpack.c.b16 %v695, %v695
      %v728 = vpack.c.b16 %v696, %v696
      %v729 = vpack.c.b16 %v697, %v697
      %v730 = vpack.c.b16 %v698, %v698
      %v731 = vpack.c.b16 %v699, %v699
      %v732 = vpack.c.b16 %v700, %v700
      %v733 = vpack.c.b16 %v701, %v701
      %v734 = vpack.c.b16 %v702, %v702
      %v735 = vpack.c.b16 %v703, %v703
      %v736 = vpack.c.b16 %v704, %v704
      %v737 = vpack.c.b16 %v705, %v705
      %v738 = vpack.c.b16 %v706, %v706
      %v739 = vpack.c.b16 %v707, %v707
      %v740 = vpack.c.b16 %v708, %v708
      %v741 = vpack.c.b16 %v709, %v709
      %v742 = vpack.c.b16 %v710, %v710
      %775 = vst [vmem:[%s179] sm:$0xf] %v711
      %776 = vst [vmem:[%s179 + $0x4] sm:$0xf] %v712
      %777 = vst [vmem:[%s179 + $0x8] sm:$0xf] %v713
      %778 = vst [vmem:[%s179 + $0xc] sm:$0xf] %v714
      %779 = vst [vmem:[%s179 + $0x10] sm:$0xf] %v715
      %780 = vst [vmem:[%s179 + $0x14] sm:$0xf] %v716
      %781 = vst [vmem:[%s179 + $0x18] sm:$0xf] %v717
      %782 = vst [vmem:[%s179 + $0x1c] sm:$0xf] %v718
      %783 = vst [vmem:[%s179 + $0x20] sm:$0xf] %v719
      %784 = vst [vmem:[%s179 + $0x24] sm:$0xf] %v720
      %785 = vst [vmem:[%s179 + $0x28] sm:$0xf] %v721
      %786 = vst [vmem:[%s179 + $0x2c] sm:$0xf] %v722
      %787 = vst [vmem:[%s179 + $0x30] sm:$0xf] %v723
      %788 = vst [vmem:[%s179 + $0x34] sm:$0xf] %v724
      %789 = vst [vmem:[%s179 + $0x38] sm:$0xf] %v725
      %790 = vst [vmem:[%s179 + $0x3c] sm:$0xf] %v726
      %791 = vst [vmem:[%s179 + $0x40] sm:$0xf] %v727
      %792 = vst [vmem:[%s179 + $0x44] sm:$0xf] %v728
      %793 = vst [vmem:[%s179 + $0x48] sm:$0xf] %v729
      %794 = vst [vmem:[%s179 + $0x4c] sm:$0xf] %v730
      %795 = vst [vmem:[%s179 + $0x50] sm:$0xf] %v731
      %796 = vst [vmem:[%s179 + $0x54] sm:$0xf] %v732
      %797 = vst [vmem:[%s179 + $0x58] sm:$0xf] %v733
      %798 = vst [vmem:[%s179 + $0x5c] sm:$0xf] %v734
      %799 = vst [vmem:[%s179 + $0x60] sm:$0xf] %v735
      %800 = vst [vmem:[%s179 + $0x64] sm:$0xf] %v736
      %801 = vst [vmem:[%s179 + $0x68] sm:$0xf] %v737
      %802 = vst [vmem:[%s179 + $0x6c] sm:$0xf] %v738
      %803 = vst [vmem:[%s179 + $0x70] sm:$0xf] %v739
      %804 = vst [vmem:[%s179 + $0x74] sm:$0xf] %v740
      %805 = vst [vmem:[%s179 + $0x78] sm:$0xf] %v741
      %806 = vst [vmem:[%s179 + $0x7c] sm:$0xf] %v742
      %s807 = smul.u32 32, %s15
      %p808 = scmp.lt.s32.totalorder %s807, 63
      %s809 = scalar_select %p808, %s807, 63
      %s810 = smul.addr %s809, 4
      %s811 = scalar_lea.vmem %s2, %s810
      %p812 = scmp.lt.s32.totalorder %s15, 1
      %s813 = scalar_select %p812, %s15, 1
      %s814 = smul.addr %s813, 8
      %s815 = scalar_lea.vmem %s3, %s814
      // Predicated region
      $region29: #{basic_conv2d.2} parent=27 // pred_check
        %p816 = pneg %p80
      $region30: #{basic_conv2d.2} parent=27 // pred_check_branch
        %818 = sbr.rel (%p816) target = $region32
      $region31: #{basic_conv2d.2} parent=27 // pred_region
        %s819 = smul.u32 32, %s15
      $region32: #{basic_conv2d.2} parent=27 // pred_fallthru
        _
      // Predicated region
      $region33: #{basic_conv2d.2} parent=27 // pred_check
        %p820 = pneg %p106
      $region34: #{basic_conv2d.2} parent=27 // pred_check_branch
        %822 = sbr.rel (%p820) target = $region36
      $region35: #{basic_conv2d.2} parent=27 // pred_region
        _
      $region36: #{basic_conv2d.2} parent=27 // pred_fallthru
        _
    $region28: #{basic_conv2d.2} parent=5 // pred_fallthru
      _
    %p823 = scmp.le.s32.totalorder 2, %s10
    // Predicated region
    $region37: #{basic_conv2d.2} parent=5 // pred_check
      %p824 = pneg %p823
    $region38: #{basic_conv2d.2} parent=5 // pred_check_branch
      %826 = sbr.rel (%p824) target = $region40
    $region39: #{basic_conv2d.2} parent=5 // pred_region
      %s827 = ssub.s32 %s10, 2
      // Predicated region
      $region41: #{basic_conv2d.2} parent=39 // pred_check
        %p828 = pneg %p86
      $region42: #{basic_conv2d.2} parent=39 // pred_check_branch
        %830 = sbr.rel (%p828) target = $region44
      $region43: #{basic_conv2d.2} parent=39 // pred_region
        %s831 = smul.u32 32, %s16
        %p832 = scmp.lt.s32.totalorder %s831, 63
        %s833 = scalar_select %p832, %s831, 63
        %s834 = smul.addr %s833, 4
        %s835 = scalar_lea.vmem %s2, %s834
      $region44: #{basic_conv2d.2} parent=39 // pred_fallthru
        _
      // Predicated region
      $region45: #{basic_conv2d.2} parent=39 // pred_check
        %p836 = pneg %p112
      $region46: #{basic_conv2d.2} parent=39 // pred_check_branch
        %838 = sbr.rel (%p836) target = $region48
      $region47: #{basic_conv2d.2} parent=39 // pred_region
        %p839 = scmp.lt.s32.totalorder %s16, 1
        %s840 = scalar_select %p839, %s16, 1
        %s841 = smul.addr %s840, 8
        %s842 = scalar_lea.vmem %s3, %s841
      $region48: #{basic_conv2d.2} parent=39 // pred_fallthru
        _
    $region40: #{basic_conv2d.2} parent=5 // pred_fallthru
      _
  $region6: #{basic_conv2d.2} parent=0 // loop_footer
    %s14 = sadd.s32 1, %s10
  $region7: #{basic_conv2d.2} parent=0 // loop_footer_branch
    %9 = sbr.rel target = $region3
  $region8: #{basic_conv2d.2} parent=0 // loop_exit
    _

</llo_original>
